<compile_context>
chip_gen: v5e
topology: v5e:2x2
jax: 0.10.0
libtpu: 0.0.40
codegen_flags: <defaults>
</compile_context>

<pallas_src>
import numpy as np
import jax
import jax.numpy as jnp
from jax.experimental import pallas as pl
from jax.experimental.pallas import tpu as pltpu


def hard_conv_kernel(x_ref, avg_ref, gamma_ref,
                     w1_ref, b1_ref, w12_ref, b12_ref,
                     w21_ref, b21_ref, wh_ref, bh_ref, out_ref):
    # x: (M*K, TB) -- features on sublanes, examples on lanes.
    x = x_ref[...].astype(jnp.float32)
    avg = avg_ref[...]                       # (M*K, M*K) block-diag per-channel averaging

    # BatchNorm2d in training mode with a batch of one per example:
    # per-example, per-channel mean and biased variance over the K positions.
    mean = jnp.dot(avg, x, preferred_element_type=jnp.float32)
    xc = x - mean
    var = jnp.dot(avg, xc * xc, preferred_element_type=jnp.float32)
    xn = xc * jax.lax.rsqrt(var + 1e-5) * gamma_ref[...]   # beta folded into b1

    mdt = w1_ref.dtype   # MXU operand dtype (f32, or bf16 when enabled)

    # Conv1d(5, 7, kernel=10) on the flat view == dense (7, M*K) contraction.
    h = jax.nn.sigmoid(jnp.dot(w1_ref[...], xn.astype(mdt),
                               preferred_element_type=jnp.float32) + b1_ref[...])
    # Conv1d(7, 10, 1)
    h = jax.nn.sigmoid(jnp.dot(w12_ref[...], h.astype(mdt),
                               preferred_element_type=jnp.float32) + b12_ref[...])
    # Conv1d(10, 7, 1)
    h = jax.nn.sigmoid(jnp.dot(w21_ref[...], h.astype(mdt),
                               preferred_element_type=jnp.float32) + b21_ref[...])
    # Fused heads: Conv1d(7, M, 1) x2 == one (2M, 7) matmul, one sigmoid,
    # one contiguous lane-dense full-block store.
    out = jax.nn.sigmoid(jnp.dot(wh_ref[...], h.astype(mdt),
                                 preferred_element_type=jnp.float32) + bh_ref[...])
    out_ref[...] = out.astype(out_ref.dtype)


def _round_up(a, m):
    return (a + m - 1) // m * m


def hard_conv_forward(x, params, M=10, K=5, *, block_b=1024, use_bf16=False):
    """x: (B, M, K) float32 (the per-example Svr_conv output).
    Returns (B, M, 2), matching torch's per-example cat((real, comp), 0).view(M, 2)."""
    gamma, beta, W1, b1, W12, b12, W21, b21, W2r, b2r, W2c, b2c = params
    B = x.shape[0]
    MK = M * K

    # --- batch tile on the lane axis: multiple of 128, capped by padded B ---
    TB = min(_round_up(block_b, 128), _round_up(B, 128))
    Bp = _round_up(B, TB)
    grid = (Bp // TB,)

    # --- batch-on-lanes repack (features on sublanes, examples on lanes) ---
    xT = x.reshape(B, MK).T                                   # (MK, B)
    xT = jnp.pad(xT, ((0, 0), (0, Bp - B)))                   # zero-pad B tail

    ch = jnp.arange(MK) // K
    avg = (ch[:, None] == ch[None, :]).astype(jnp.float32) / K   # (MK, MK)
    gamma_f = jnp.repeat(gamma, K)[:, None].astype(jnp.float32)  # (MK, 1)
    beta_f = jnp.repeat(beta, K)[:, None].astype(jnp.float32)    # (MK, 1)

    w1 = W1.reshape(7, MK)                        # Conv1d(5,7,10) full contraction
    w12 = W12[:, :, 0]                            # (10, 7)
    w21 = W21[:, :, 0]                            # (7, 10)
    wh = jnp.concatenate([W2r[:, :, 0], W2c[:, :, 0]], axis=0)   # fused heads (2M, 7)

    b1e = b1[:, None] + w1 @ beta_f               # fold BN beta into first bias
    b12e = b12[:, None]
    b21e = b21[:, None]
    bhe = jnp.concatenate([b2r, b2c])[:, None]    # (2M, 1)

    mdt = jnp.bfloat16 if use_bf16 else jnp.float32
    xT = xT.astype(mdt)
    w1 = w1.astype(mdt)
    w12 = w12.astype(mdt)
    w21 = w21.astype(mdt)
    wh = wh.astype(mdt)

    def const2(shape):                            # resident (weights) blocks
        return pl.BlockSpec(shape, lambda i: (0, 0))

    in_specs = [
        pl.BlockSpec((MK, TB), lambda i: (0, i)),   # x: tiled over batch
        const2((MK, MK)),                           # avg
        const2((MK, 1)),                            # gamma
        const2((7, MK)), const2((7, 1)),            # w1, b1(+beta)
        const2((10, 7)), const2((10, 1)),           # w12, b12
        const2((7, 10)), const2((7, 1)),            # w21, b21
        const2((2 * M, 7)), const2((2 * M, 1)),     # fused head weight/bias
    ]
    out_spec = pl.BlockSpec((2 * M, TB), lambda i: (0, i))

    elem_bytes = 2 if use_bf16 else 4
    flops = Bp * (2 * (2 * MK * MK + 7 * MK + 10 * 7 + 7 * 10 + 2 * M * 7) + 10 * MK)
    transcendentals = Bp * (7 + 10 + 7 + 2 * M)
    bytes_accessed = (Bp * MK * elem_bytes + Bp * 2 * M * 4
                      + 4 * (MK * MK + MK + MK)
                      + elem_bytes * (7 * MK + 10 * 7 + 7 * 10 + 2 * M * 7)
                      + 4 * (7 + 10 + 7 + 2 * M))

    out = pl.pallas_call(
        hard_conv_kernel,
        out_shape=jax.ShapeDtypeStruct((2 * M, Bp), jnp.float32),
        grid=grid,
        in_specs=in_specs,
        out_specs=out_spec,
        compiler_params=pltpu.CompilerParams(
            dimension_semantics=("parallel",),          # shard batch tiles across TCs (v7x)
            vmem_limit_bytes=32 * 1024 * 1024),         # v7x-safe, large headroom
        cost_estimate=pl.CostEstimate(
            flops=flops, transcendentals=transcendentals,
            bytes_accessed=bytes_accessed),
    )(xT, avg, gamma_f, w1, b1e, w12, b12e, w21, b21e, wh, bhe)

    # drop padded lanes, back to (B, M, 2) == cat((real, comp), 0).view(M, 2)
    return out[:, :B].T.reshape(B, M, 2)


def hard_conv_reference(x, params, M=10, K=5):
    """Plain-JAX replica of the PyTorch forward (per-example BN + conv stack)."""
    gamma, beta, W1, b1, W12, b12, W21, b21, W2r, b2r, W2c, b2c = params
    B = x.shape[0]
    mean = x.mean(axis=2, keepdims=True)
    var = jnp.square(x - mean).mean(axis=2, keepdims=True)
    xn = (x - mean) / jnp.sqrt(var + 1e-5) * gamma[None, :, None] + beta[None, :, None]
    h = xn.reshape(B, M * K)
    sig = jax.nn.sigmoid
    h = sig(h @ W1.reshape(7, -1).T + b1)
    h = sig(h @ W12[:, :, 0].T + b12)
    h = sig(h @ W21[:, :, 0].T + b21)
    real = sig(h @ W2r[:, :, 0].T + b2r)
    comp = sig(h @ W2c[:, :, 0].T + b2c)
    return jnp.concatenate([real, comp], axis=1).reshape(B, M, 2)


if __name__ == "__main__":
    M, K = 10, 5
    key = jax.random.PRNGKey(0)
    ks = jax.random.split(key, 14)

    # deterministic synthetic parameters (shapes from Hard_Conv.__init__)
    gamma = 1.0 + 0.1 * jax.random.normal(ks[0], (M,), jnp.float32)   # bn1.weight
    beta = 0.1 * jax.random.normal(ks[1], (M,), jnp.float32)          # bn1.bias
    W1 = 0.2 * jax.random.normal(ks[2], (7, 5, 10), jnp.float32)      # x1
    b1 = 0.1 * jax.random.normal(ks[3], (7,), jnp.float32)
    W12 = 0.2 * jax.random.normal(ks[4], (10, 7, 1), jnp.float32)     # x12
    b12 = 0.1 * jax.random.normal(ks[5], (10,), jnp.float32)
    W21 = 0.2 * jax.random.normal(ks[6], (7, 10, 1), jnp.float32)     # x21
    b21 = 0.1 * jax.random.normal(ks[7], (7,), jnp.float32)
    W2r = 0.2 * jax.random.normal(ks[8], (10, 7, 1), jnp.float32)     # x2
    b2r = 0.1 * jax.random.normal(ks[9], (10,), jnp.float32)
    W2c = 0.2 * jax.random.normal(ks[10], (10, 7, 1), jnp.float32)    # x2_1
    b2c = 0.1 * jax.random.normal(ks[11], (10,), jnp.float32)
    params = (gamma, beta, W1, b1, W12, b12, W21, b21, W2r, b2r, W2c, b2c)

    # TODO(synk): Svr_conv(x, K) is an undefined external preprocessing function
    # in the reference; the kernel consumes its (M, K) per-example output directly.

    # small-batch check (single grid step)
    B = 6
    x = jax.random.normal(ks[12], (B, M, K), jnp.float32)
    out = jax.block_until_ready(hard_conv_forward(x, params, M=M, K=K))
    ref = hard_conv_reference(x, params, M=M, K=K)
    assert out.shape == (B, M, 2)
    np.testing.assert_allclose(np.asarray(out), np.asarray(ref), rtol=1e-3, atol=1e-3)

    # multi-tile grid + B-tail padding check
    B2 = 300
    x2 = jax.random.normal(ks[13], (B2, M, K), jnp.float32)
    out2 = jax.block_until_ready(hard_conv_forward(x2, params, M=M, K=K, block_b=128))
    ref2 = hard_conv_reference(x2, params, M=M, K=K)
    np.testing.assert_allclose(np.asarray(out2), np.asarray(ref2), rtol=1e-3, atol=1e-3)

    # bf16 storage path (f32 element-wise math inside the kernel), looser tolerance
    out3 = jax.block_until_ready(
        hard_conv_forward(x2, params, M=M, K=K, block_b=128, use_bf16=True))
    np.testing.assert_allclose(np.asarray(out3), np.asarray(ref2), rtol=5e-2, atol=2e-2)

    print("KERNEL_OK")
</pallas_src>

<mosaic_0001>
module attributes {stable_mosaic.version = 11 : i64} {
  func.func @hard_conv_kernel(%arg0: i32, %arg1: memref<50x128xf32, #tpu.memory_space<vmem>>, %arg2: memref<50x50xf32, #tpu.memory_space<vmem>>, %arg3: memref<50x1xf32, #tpu.memory_space<vmem>>, %arg4: memref<7x50xf32, #tpu.memory_space<vmem>>, %arg5: memref<7x1xf32, #tpu.memory_space<vmem>>, %arg6: memref<10x7xf32, #tpu.memory_space<vmem>>, %arg7: memref<10x1xf32, #tpu.memory_space<vmem>>, %arg8: memref<7x10xf32, #tpu.memory_space<vmem>>, %arg9: memref<7x1xf32, #tpu.memory_space<vmem>>, %arg10: memref<20x7xf32, #tpu.memory_space<vmem>>, %arg11: memref<20x1xf32, #tpu.memory_space<vmem>>, %arg12: memref<20x128xf32, #tpu.memory_space<vmem>>) attributes {dimension_semantics = [#tpu.dimension_semantics<parallel>], iteration_bounds = array<i64: 1>, scalar_prefetch = 0 : i64, scratch_operands = 0 : i64, tpu.core_type = #tpu.core_type<tc>, window_params = [{transform_indices = @transform_0, window_bounds = array<i64: 50, 128>}, {pipeline_mode = #tpu.pipeline_mode<synchronous>, transform_indices = @transform_1, window_bounds = array<i64: 50, 50>}, {pipeline_mode = #tpu.pipeline_mode<synchronous>, transform_indices = @transform_2, window_bounds = array<i64: 50, 1>}, {pipeline_mode = #tpu.pipeline_mode<synchronous>, transform_indices = @transform_3, window_bounds = array<i64: 7, 50>}, {pipeline_mode = #tpu.pipeline_mode<synchronous>, transform_indices = @transform_4, window_bounds = array<i64: 7, 1>}, {pipeline_mode = #tpu.pipeline_mode<synchronous>, transform_indices = @transform_5, window_bounds = array<i64: 10, 7>}, {pipeline_mode = #tpu.pipeline_mode<synchronous>, transform_indices = @transform_6, window_bounds = array<i64: 10, 1>}, {pipeline_mode = #tpu.pipeline_mode<synchronous>, transform_indices = @transform_7, window_bounds = array<i64: 7, 10>}, {pipeline_mode = #tpu.pipeline_mode<synchronous>, transform_indices = @transform_8, window_bounds = array<i64: 7, 1>}, {pipeline_mode = #tpu.pipeline_mode<synchronous>, transform_indices = @transform_9, window_bounds = array<i64: 20, 7>}, {pipeline_mode = #tpu.pipeline_mode<synchronous>, transform_indices = @transform_10, window_bounds = array<i64: 20, 1>}, {transform_indices = @transform_11, window_bounds = array<i64: 20, 128>}]} {
    %c0 = arith.constant 0 : index
    %c0_0 = arith.constant 0 : index
    %0 = vector.load %arg1[%c0, %c0_0] : memref<50x128xf32, #tpu.memory_space<vmem>>, vector<50x128xf32>
    %c0_1 = arith.constant 0 : index
    %c0_2 = arith.constant 0 : index
    %1 = vector.load %arg2[%c0_1, %c0_2] : memref<50x50xf32, #tpu.memory_space<vmem>>, vector<50x50xf32>
    %cst = arith.constant dense<0.000000e+00> : vector<50x128xf32>
    %2 = tpu.matmul %1, %0, %cst {dimension_numbers = #tpu.dot_dimension_numbers<[1], [0], [0], [1], [0, 0, 1, 1], [], []>} : vector<50x50xf32>, vector<50x128xf32>, vector<50x128xf32> -> vector<50x128xf32>
    %3 = arith.subf %0, %2 : vector<50x128xf32>
    %4 = arith.mulf %3, %3 : vector<50x128xf32>
    %cst_3 = arith.constant dense<0.000000e+00> : vector<50x128xf32>
    %5 = tpu.matmul %1, %4, %cst_3 {dimension_numbers = #tpu.dot_dimension_numbers<[1], [0], [0], [1], [0, 0, 1, 1], [], []>} : vector<50x50xf32>, vector<50x128xf32>, vector<50x128xf32> -> vector<50x128xf32>
    %cst_4 = arith.constant 9.99999974E-6 : f32
    %6 = vector.broadcast %cst_4 : f32 to vector<50x128xf32>
    %7 = arith.addf %5, %6 : vector<50x128xf32>
    %8 = math.rsqrt %7 : vector<50x128xf32>
    %9 = arith.mulf %3, %8 : vector<50x128xf32>
    %c0_5 = arith.constant 0 : index
    %c0_6 = arith.constant 0 : index
    %10 = vector.load %arg3[%c0_5, %c0_6] : memref<50x1xf32, #tpu.memory_space<vmem>>, vector<50x1xf32>
    %11 = vector.broadcast %10 : vector<50x1xf32> to vector<50x128xf32>
    %12 = arith.mulf %9, %11 : vector<50x128xf32>
    %c0_7 = arith.constant 0 : index
    %c0_8 = arith.constant 0 : index
    %13 = vector.load %arg4[%c0_7, %c0_8] : memref<7x50xf32, #tpu.memory_space<vmem>>, vector<7x50xf32>
    %cst_9 = arith.constant dense<0.000000e+00> : vector<7x128xf32>
    %14 = tpu.matmul %13, %12, %cst_9 {dimension_numbers = #tpu.dot_dimension_numbers<[1], [0], [0], [1], [0, 0, 1, 1], [], []>} : vector<7x50xf32>, vector<50x128xf32>, vector<7x128xf32> -> vector<7x128xf32>
    %c0_10 = arith.constant 0 : index
    %c0_11 = arith.constant 0 : index
    %15 = vector.load %arg5[%c0_10, %c0_11] : memref<7x1xf32, #tpu.memory_space<vmem>>, vector<7x1xf32>
    %16 = vector.broadcast %15 : vector<7x1xf32> to vector<7x128xf32>
    %17 = arith.addf %14, %16 : vector<7x128xf32>
    %18 = arith.negf %17 : vector<7x128xf32>
    %19 = math.exp %18 : vector<7x128xf32>
    %cst_12 = arith.constant 1.000000e+00 : f32
    %20 = vector.broadcast %cst_12 : f32 to vector<7x128xf32>
    %21 = arith.addf %20, %19 : vector<7x128xf32>
    %22 = arith.divf %20, %21 : vector<7x128xf32>
    %c0_13 = arith.constant 0 : index
    %c0_14 = arith.constant 0 : index
    %23 = vector.load %arg6[%c0_13, %c0_14] : memref<10x7xf32, #tpu.memory_space<vmem>>, vector<10x7xf32>
    %cst_15 = arith.constant dense<0.000000e+00> : vector<10x128xf32>
    %24 = tpu.matmul %23, %22, %cst_15 {dimension_numbers = #tpu.dot_dimension_numbers<[1], [0], [0], [1], [0, 0, 1, 1], [], []>} : vector<10x7xf32>, vector<7x128xf32>, vector<10x128xf32> -> vector<10x128xf32>
    %c0_16 = arith.constant 0 : index
    %c0_17 = arith.constant 0 : index
    %25 = vector.load %arg7[%c0_16, %c0_17] : memref<10x1xf32, #tpu.memory_space<vmem>>, vector<10x1xf32>
    %26 = vector.broadcast %25 : vector<10x1xf32> to vector<10x128xf32>
    %27 = arith.addf %24, %26 : vector<10x128xf32>
    %28 = arith.negf %27 : vector<10x128xf32>
    %29 = math.exp %28 : vector<10x128xf32>
    %cst_18 = arith.constant 1.000000e+00 : f32
    %30 = vector.broadcast %cst_18 : f32 to vector<10x128xf32>
    %31 = arith.addf %30, %29 : vector<10x128xf32>
    %32 = arith.divf %30, %31 : vector<10x128xf32>
    %c0_19 = arith.constant 0 : index
    %c0_20 = arith.constant 0 : index
    %33 = vector.load %arg8[%c0_19, %c0_20] : memref<7x10xf32, #tpu.memory_space<vmem>>, vector<7x10xf32>
    %cst_21 = arith.constant dense<0.000000e+00> : vector<7x128xf32>
    %34 = tpu.matmul %33, %32, %cst_21 {dimension_numbers = #tpu.dot_dimension_numbers<[1], [0], [0], [1], [0, 0, 1, 1], [], []>} : vector<7x10xf32>, vector<10x128xf32>, vector<7x128xf32> -> vector<7x128xf32>
    %c0_22 = arith.constant 0 : index
    %c0_23 = arith.constant 0 : index
    %35 = vector.load %arg9[%c0_22, %c0_23] : memref<7x1xf32, #tpu.memory_space<vmem>>, vector<7x1xf32>
    %36 = vector.broadcast %35 : vector<7x1xf32> to vector<7x128xf32>
    %37 = arith.addf %34, %36 : vector<7x128xf32>
    %38 = arith.negf %37 : vector<7x128xf32>
    %39 = math.exp %38 : vector<7x128xf32>
    %cst_24 = arith.constant 1.000000e+00 : f32
    %40 = vector.broadcast %cst_24 : f32 to vector<7x128xf32>
    %41 = arith.addf %40, %39 : vector<7x128xf32>
    %42 = arith.divf %40, %41 : vector<7x128xf32>
    %c0_25 = arith.constant 0 : index
    %c0_26 = arith.constant 0 : index
    %43 = vector.load %arg10[%c0_25, %c0_26] : memref<20x7xf32, #tpu.memory_space<vmem>>, vector<20x7xf32>
    %cst_27 = arith.constant dense<0.000000e+00> : vector<20x128xf32>
    %44 = tpu.matmul %43, %42, %cst_27 {dimension_numbers = #tpu.dot_dimension_numbers<[1], [0], [0], [1], [0, 0, 1, 1], [], []>} : vector<20x7xf32>, vector<7x128xf32>, vector<20x128xf32> -> vector<20x128xf32>
    %c0_28 = arith.constant 0 : index
    %c0_29 = arith.constant 0 : index
    %45 = vector.load %arg11[%c0_28, %c0_29] : memref<20x1xf32, #tpu.memory_space<vmem>>, vector<20x1xf32>
    %46 = vector.broadcast %45 : vector<20x1xf32> to vector<20x128xf32>
    %47 = arith.addf %44, %46 : vector<20x128xf32>
    %48 = arith.negf %47 : vector<20x128xf32>
    %49 = math.exp %48 : vector<20x128xf32>
    %cst_30 = arith.constant 1.000000e+00 : f32
    %50 = vector.broadcast %cst_30 : f32 to vector<20x128xf32>
    %51 = arith.addf %50, %49 : vector<20x128xf32>
    %52 = arith.divf %50, %51 : vector<20x128xf32>
    %c0_31 = arith.constant 0 : index
    %c0_32 = arith.constant 0 : index
    %53 = vector.load %arg12[%c0_31, %c0_32] : memref<20x128xf32, #tpu.memory_space<vmem>>, vector<20x128xf32>
    tpu.vector_store %arg12[%c0_31, %c0_32], %52 {strides = array<i32>} : memref<20x128xf32, #tpu.memory_space<vmem>>, vector<20x128xf32>,
    return
  }
  func.func @transform_0(%arg0: i32) -> (i32, i32) {
    %c0_i32 = arith.constant 0 : i32
    %c0_i32_0 = arith.constant 0 : i32
    return %c0_i32, %arg0 : i32, i32
  }
  func.func @transform_1(%arg0: i32) -> (i32, i32) {
    %c0_i32 = arith.constant 0 : i32
    %c0_i32_0 = arith.constant 0 : i32
    %c0_i32_1 = arith.constant 0 : i32
    return %c0_i32, %c0_i32_0 : i32, i32
  }
  func.func @transform_2(%arg0: i32) -> (i32, i32) {
    %c0_i32 = arith.constant 0 : i32
    %c0_i32_0 = arith.constant 0 : i32
    %c0_i32_1 = arith.constant 0 : i32
    return %c0_i32, %c0_i32_0 : i32, i32
  }
  func.func @transform_3(%arg0: i32) -> (i32, i32) {
    %c0_i32 = arith.constant 0 : i32
    %c0_i32_0 = arith.constant 0 : i32
    %c0_i32_1 = arith.constant 0 : i32
    return %c0_i32, %c0_i32_0 : i32, i32
  }
  func.func @transform_4(%arg0: i32) -> (i32, i32) {
    %c0_i32 = arith.constant 0 : i32
    %c0_i32_0 = arith.constant 0 : i32
    %c0_i32_1 = arith.constant 0 : i32
    return %c0_i32, %c0_i32_0 : i32, i32
  }
  func.func @transform_5(%arg0: i32) -> (i32, i32) {
    %c0_i32 = arith.constant 0 : i32
    %c0_i32_0 = arith.constant 0 : i32
    %c0_i32_1 = arith.constant 0 : i32
    return %c0_i32, %c0_i32_0 : i32, i32
  }
  func.func @transform_6(%arg0: i32) -> (i32, i32) {
    %c0_i32 = arith.constant 0 : i32
    %c0_i32_0 = arith.constant 0 : i32
    %c0_i32_1 = arith.constant 0 : i32
    return %c0_i32, %c0_i32_0 : i32, i32
  }
  func.func @transform_7(%arg0: i32) -> (i32, i32) {
    %c0_i32 = arith.constant 0 : i32
    %c0_i32_0 = arith.constant 0 : i32
    %c0_i32_1 = arith.constant 0 : i32
    return %c0_i32, %c0_i32_0 : i32, i32
  }
  func.func @transform_8(%arg0: i32) -> (i32, i32) {
    %c0_i32 = arith.constant 0 : i32
    %c0_i32_0 = arith.constant 0 : i32
    %c0_i32_1 = arith.constant 0 : i32
    return %c0_i32, %c0_i32_0 : i32, i32
  }
  func.func @transform_9(%arg0: i32) -> (i32, i32) {
    %c0_i32 = arith.constant 0 : i32
    %c0_i32_0 = arith.constant 0 : i32
    %c0_i32_1 = arith.constant 0 : i32
    return %c0_i32, %c0_i32_0 : i32, i32
  }
  func.func @transform_10(%arg0: i32) -> (i32, i32) {
    %c0_i32 = arith.constant 0 : i32
    %c0_i32_0 = arith.constant 0 : i32
    %c0_i32_1 = arith.constant 0 : i32
    return %c0_i32, %c0_i32_0 : i32, i32
  }
  func.func @transform_11(%arg0: i32) -> (i32, i32) {
    %c0_i32 = arith.constant 0 : i32
    %c0_i32_0 = arith.constant 0 : i32
    return %c0_i32, %arg0 : i32, i32
  }
}

</mosaic_0001>

<llo_original>
// kernel: tpu_custom_call.1
$region0: #{tpu_custom_call.1}
  #allocation0 [shape = 'u32[]', space=smem, size = 0x4, offset = 0x4, fixed_abs, tag = 'smem constant byte address 0x4 - core index']
  #allocation1 [shape = 'u32[72,128]{1,0:T(1,128)}', space=vmem, size = 0x9000, scoped, tag = 'internal scratch']
  %s0 = inlined_call_operand.vmem [shape: f32[50,128], index: 0, kind: input, shape index: {}]
  %s1 = inlined_call_operand.vmem [shape: f32[50,50], index: 1, kind: input, shape index: {}]
  %s2 = inlined_call_operand.vmem [shape: f32[50,1], index: 2, kind: input, shape index: {}]
  %s3 = inlined_call_operand.vmem [shape: f32[7,50], index: 3, kind: input, shape index: {}]
  %s4 = inlined_call_operand.vmem [shape: f32[7,1], index: 4, kind: input, shape index: {}]
  %s5 = inlined_call_operand.vmem [shape: f32[10,7], index: 5, kind: input, shape index: {}]
  %s6 = inlined_call_operand.vmem [shape: f32[10,1], index: 6, kind: input, shape index: {}]
  %s7 = inlined_call_operand.vmem [shape: f32[7,10], index: 7, kind: input, shape index: {}]
  %s8 = inlined_call_operand.vmem [shape: f32[7,1], index: 8, kind: input, shape index: {}]
  %s9 = inlined_call_operand.vmem [shape: f32[20,7], index: 9, kind: input, shape index: {}]
  %s10 = inlined_call_operand.vmem [shape: f32[20,1], index: 10, kind: input, shape index: {}]
  %s11 = inlined_call_operand.hbm [shape: f32[20,128], index: 11, kind: output, shape index: {}]
  %s12 = sld [smem:[#allocation0]]
  $region54: #{tpu_custom_call.1} parent=0
    _
  %s14 = ssub.s32 1, %s12
  %s15 = scalar_select 0, %s14, %s12
  $region1: #{tpu_custom_call.1} parent=0
    #allocation2 [shape = 'u8[12288]{0}', space=vmem, size = 0x3000, scoped, tag = 'output window, operand 0, single buffered']
    #allocation3 [shape = 's32[1]{0}', space=sflag, size = 0x4, scoped, tag = 'scoped memory for tpu_custom_call.1']
    %16 = vsyncpa [#allocation3], 0
    // Predicated region
    $region2: #{tpu_custom_call.1} parent=1 // pred_check
      _
    $region3: #{tpu_custom_call.1} parent=1 // pred_check_branch
      %18 = sbr.rel (0) target = $region5
    $region4: #{tpu_custom_call.1} parent=1 // pred_region
      _
    $region5: #{tpu_custom_call.1} parent=1 // pred_fallthru
      _
    // Predicated region
    $region6: #{tpu_custom_call.1} parent=1 // pred_check
      _
    $region7: #{tpu_custom_call.1} parent=1 // pred_check_branch
      %20 = sbr.rel (0) target = $region9
    $region8: #{tpu_custom_call.1} parent=1 // pred_region
      _
    $region9: #{tpu_custom_call.1} parent=1 // pred_fallthru
      _
    // Predicated region
    $region10: #{tpu_custom_call.1} parent=1 // pred_check
      _
    $region11: #{tpu_custom_call.1} parent=1 // pred_check_branch
      %22 = sbr.rel (0) target = $region13
    $region12: #{tpu_custom_call.1} parent=1 // pred_region
      _
    $region13: #{tpu_custom_call.1} parent=1 // pred_fallthru
      _
    // Predicated region
    $region14: #{tpu_custom_call.1} parent=1 // pred_check
      _
    $region15: #{tpu_custom_call.1} parent=1 // pred_check_branch
      %24 = sbr.rel (0) target = $region17
    $region16: #{tpu_custom_call.1} parent=1 // pred_region
      _
    $region17: #{tpu_custom_call.1} parent=1 // pred_fallthru
      _
    // Predicated region
    $region18: #{tpu_custom_call.1} parent=1 // pred_check
      _
    $region19: #{tpu_custom_call.1} parent=1 // pred_check_branch
      %26 = sbr.rel (0) target = $region21
    $region20: #{tpu_custom_call.1} parent=1 // pred_region
      _
    $region21: #{tpu_custom_call.1} parent=1 // pred_fallthru
      _
    // Predicated region
    $region22: #{tpu_custom_call.1} parent=1 // pred_check
      _
    $region23: #{tpu_custom_call.1} parent=1 // pred_check_branch
      %28 = sbr.rel (0) target = $region25
    $region24: #{tpu_custom_call.1} parent=1 // pred_region
      _
    $region25: #{tpu_custom_call.1} parent=1 // pred_fallthru
      _
    // Predicated region
    $region26: #{tpu_custom_call.1} parent=1 // pred_check
      _
    $region27: #{tpu_custom_call.1} parent=1 // pred_check_branch
      %30 = sbr.rel (0) target = $region29
    $region28: #{tpu_custom_call.1} parent=1 // pred_region
      _
    $region29: #{tpu_custom_call.1} parent=1 // pred_fallthru
      _
    // Predicated region
    $region30: #{tpu_custom_call.1} parent=1 // pred_check
      _
    $region31: #{tpu_custom_call.1} parent=1 // pred_check_branch
      %32 = sbr.rel (0) target = $region33
    $region32: #{tpu_custom_call.1} parent=1 // pred_region
      _
    $region33: #{tpu_custom_call.1} parent=1 // pred_fallthru
      _
    // Predicated region
    $region34: #{tpu_custom_call.1} parent=1 // pred_check
      _
    $region35: #{tpu_custom_call.1} parent=1 // pred_check_branch
      %34 = sbr.rel (0) target = $region37
    $region36: #{tpu_custom_call.1} parent=1 // pred_region
      _
    $region37: #{tpu_custom_call.1} parent=1 // pred_fallthru
      _
    // Predicated region
    $region38: #{tpu_custom_call.1} parent=1 // pred_check
      _
    $region39: #{tpu_custom_call.1} parent=1 // pred_check_branch
      %36 = sbr.rel (0) target = $region41
    $region40: #{tpu_custom_call.1} parent=1 // pred_region
      _
    $region41: #{tpu_custom_call.1} parent=1 // pred_fallthru
      _
    // Predicated region
    $region42: #{tpu_custom_call.1} parent=1 // pred_check
      _
    $region43: #{tpu_custom_call.1} parent=1 // pred_check_branch
      %38 = sbr.rel (0) target = $region45
    $region44: #{tpu_custom_call.1} parent=1 // pred_region
      _
    $region45: #{tpu_custom_call.1} parent=1 // pred_fallthru
      _
    %v39 = vld [vmem:[%s0] sm:$0xff]
    %v40 = vld [vmem:[%s0 + $0x8] sm:$0xff]
    %v41 = vld [vmem:[%s0 + $0x10] sm:$0xff]
    %v42 = vld [vmem:[%s0 + $0x18] sm:$0xff]
    %v43 = vld [vmem:[%s0 + $0x20] sm:$0xff]
    %v44 = vld [vmem:[%s0 + $0x28] sm:$0xff]
    %v45 = vld [vmem:[%s0 + $0x30] sm:$0x3]
    %v46 = vld [vmem:[%s1] sm:$0xff]
    %v47 = vld [vmem:[%s1 + $0x8] sm:$0xff]
    %v48 = vld [vmem:[%s1 + $0x10] sm:$0xff]
    %v49 = vld [vmem:[%s1 + $0x18] sm:$0xff]
    %v50 = vld [vmem:[%s1 + $0x20] sm:$0xff]
    %v51 = vld [vmem:[%s1 + $0x28] sm:$0xff]
    %v52 = vld [vmem:[%s1 + $0x30] sm:$0x3]
    %vm53 = vcmask 408576
    %v55 = vsel %vm53, %v46, 0
    %v58 = vsel %vm53, %v47, 0
    %v61 = vsel %vm53, %v48, 0
    %v64 = vsel %vm53, %v49, 0
    %v67 = vsel %vm53, %v50, 0
    %v70 = vsel %vm53, %v51, 0
    %v73 = vsel %vm53, %v52, 0
    %vm75 = vcmask 1041408
    %v77 = vsel %vm75, %v45, 0
    %79 = vmatpush.msra.mxu0 0.0
    %80 = vmatpush.msra.mxu0 0.0
    %81 = vmatpush.msra.mxu0 0.0
    %82 = vmatpush.msra.mxu0 0.0
    %83 = vmatpush.msra.mxu0 0.0
    %84 = vmatpush.msra.mxu0 0.0
    %85 = vmatpush.msra.mxu0 0.0
    %86 = vmatpush.msra.mxu0 0.0
    %87 = vmatpush.msra.mxu0 0.0
    %88 = vmatpush.msra.mxu0 %v77
    %89 = vmatpush.msra.mxu0 %v44
    %90 = vmatpush.msra.mxu0 %v43
    %91 = vmatpush.msra.mxu0 %v42
    %92 = vmatpush.msra.mxu0 %v41
    %93 = vmatpush.msra.mxu0 %v40
    %94 = vmatpush.msra.mxu0 %v39
    %95 = vmatmul.f32.gmra.mxu0 %v55
    %v96 = vpop.f32.mrf.mxu0
    %v97 = vadd.f32 0.0, %v96
    %98 = vmatmul.f32.gmra.mxu0 %v58
    %v99 = vpop.f32.mrf.mxu0
    %v100 = vadd.f32 0.0, %v99
    %101 = vmatmul.f32.gmra.mxu0 %v61
    %v102 = vpop.f32.mrf.mxu0
    %v103 = vadd.f32 0.0, %v102
    %104 = vmatmul.f32.gmra.mxu0 %v64
    %v105 = vpop.f32.mrf.mxu0
    %v106 = vadd.f32 0.0, %v105
    %107 = vmatmul.f32.gmra.mxu0 %v67
    %v108 = vpop.f32.mrf.mxu0
    %v109 = vadd.f32 0.0, %v108
    %110 = vmatmul.f32.gmra.mxu0 %v70
    %v111 = vpop.f32.mrf.mxu0
    %v112 = vadd.f32 0.0, %v111
    %113 = vmatmul.f32.gmra.mxu0 %v73
    %v114 = vpop.f32.mrf.mxu0
    %v115 = vadd.f32 0.0, %v114
    %116 = vdwg.mxu0
    %v117 = vsub.f32 %v39, %v97
    %v118 = vsub.f32 %v40, %v100
    %v119 = vsub.f32 %v41, %v103
    %v120 = vsub.f32 %v42, %v106
    %v121 = vsub.f32 %v43, %v109
    %v122 = vsub.f32 %v44, %v112
    %v123 = vsub.f32 %v45, %v115
    %v124 = vmul.f32 %v117, %v117
    %v125 = vmul.f32 %v118, %v118
    %v126 = vmul.f32 %v119, %v119
    %v127 = vmul.f32 %v120, %v120
    %v128 = vmul.f32 %v121, %v121
    %v129 = vmul.f32 %v122, %v122
    %v130 = vmul.f32 %v123, %v123
    %v132 = vsel %vm75, %v130, 0
    %134 = vmatpush.msra.mxu0 0.0
    %135 = vmatpush.msra.mxu0 0.0
    %136 = vmatpush.msra.mxu0 0.0
    %137 = vmatpush.msra.mxu0 0.0
    %138 = vmatpush.msra.mxu0 0.0
    %139 = vmatpush.msra.mxu0 0.0
    %140 = vmatpush.msra.mxu0 0.0
    %141 = vmatpush.msra.mxu0 0.0
    %142 = vmatpush.msra.mxu0 0.0
    %143 = vmatpush.msra.mxu0 %v132
    %144 = vmatpush.msra.mxu0 %v129
    %145 = vmatpush.msra.mxu0 %v128
    %146 = vmatpush.msra.mxu0 %v127
    %147 = vmatpush.msra.mxu0 %v126
    %148 = vmatpush.msra.mxu0 %v125
    %149 = vmatpush.msra.mxu0 %v124
    %150 = vmatmul.f32.gmra.mxu0 %v55
    %v151 = vpop.f32.mrf.mxu0
    %v152 = vadd.f32 1e-05, %v151
    %153 = vmatmul.f32.gmra.mxu0 %v58
    %v154 = vpop.f32.mrf.mxu0
    %v155 = vadd.f32 1e-05, %v154
    %156 = vmatmul.f32.gmra.mxu0 %v61
    %v157 = vpop.f32.mrf.mxu0
    %v158 = vadd.f32 1e-05, %v157
    %159 = vmatmul.f32.gmra.mxu0 %v64
    %v160 = vpop.f32.mrf.mxu0
    %v161 = vadd.f32 1e-05, %v160
    %162 = vmatmul.f32.gmra.mxu0 %v67
    %v163 = vpop.f32.mrf.mxu0
    %v164 = vadd.f32 1e-05, %v163
    %165 = vmatmul.f32.gmra.mxu0 %v70
    %v166 = vpop.f32.mrf.mxu0
    %v167 = vadd.f32 1e-05, %v166
    %168 = vmatmul.f32.gmra.mxu0 %v73
    %v169 = vpop.f32.mrf.mxu0
    %v170 = vadd.f32 1e-05, %v169
    %171 = vdwg.mxu0
    %v172 = vrsqrt.pop %v152
    %v173 = vmul.f32 %v172, %v152
    %v174 = vmul.f32 %v173, %v172
    %v175 = vmul.f32 0.5, %v174
    %v176 = vsub.f32 1.5, %v175
    %v177 = vmul.f32 %v172, %v176
    %vm178 = vweird.f32 %v152
    %vm179 = vweird.f32 %v172
    %vm180 = vmor %vm178, %vm179
    %v181 = vsel %vm180, %v172, %v177
    %v182 = vrsqrt.pop %v155
    %v183 = vmul.f32 %v182, %v155
    %v184 = vmul.f32 %v183, %v182
    %v185 = vmul.f32 0.5, %v184
    %v186 = vsub.f32 1.5, %v185
    %v187 = vmul.f32 %v182, %v186
    %vm188 = vweird.f32 %v155
    %vm189 = vweird.f32 %v182
    %vm190 = vmor %vm188, %vm189
    %v191 = vsel %vm190, %v182, %v187
    %v192 = vrsqrt.pop %v158
    %v193 = vmul.f32 %v192, %v158
    %v194 = vmul.f32 %v193, %v192
    %v195 = vmul.f32 0.5, %v194
    %v196 = vsub.f32 1.5, %v195
    %v197 = vmul.f32 %v192, %v196
    %vm198 = vweird.f32 %v158
    %vm199 = vweird.f32 %v192
    %vm200 = vmor %vm198, %vm199
    %v201 = vsel %vm200, %v192, %v197
    %v202 = vrsqrt.pop %v161
    %v203 = vmul.f32 %v202, %v161
    %v204 = vmul.f32 %v203, %v202
    %v205 = vmul.f32 0.5, %v204
    %v206 = vsub.f32 1.5, %v205
    %v207 = vmul.f32 %v202, %v206
    %vm208 = vweird.f32 %v161
    %vm209 = vweird.f32 %v202
    %vm210 = vmor %vm208, %vm209
    %v211 = vsel %vm210, %v202, %v207
    %v212 = vrsqrt.pop %v164
    %v213 = vmul.f32 %v212, %v164
    %v214 = vmul.f32 %v213, %v212
    %v215 = vmul.f32 0.5, %v214
    %v216 = vsub.f32 1.5, %v215
    %v217 = vmul.f32 %v212, %v216
    %vm218 = vweird.f32 %v164
    %vm219 = vweird.f32 %v212
    %vm220 = vmor %vm218, %vm219
    %v221 = vsel %vm220, %v212, %v217
    %v222 = vrsqrt.pop %v167
    %v223 = vmul.f32 %v222, %v167
    %v224 = vmul.f32 %v223, %v222
    %v225 = vmul.f32 0.5, %v224
    %v226 = vsub.f32 1.5, %v225
    %v227 = vmul.f32 %v222, %v226
    %vm228 = vweird.f32 %v167
    %vm229 = vweird.f32 %v222
    %vm230 = vmor %vm228, %vm229
    %v231 = vsel %vm230, %v222, %v227
    %v232 = vrsqrt.pop %v170
    %v233 = vmul.f32 %v232, %v170
    %v234 = vmul.f32 %v233, %v232
    %v235 = vmul.f32 0.5, %v234
    %v236 = vsub.f32 1.5, %v235
    %v237 = vmul.f32 %v232, %v236
    %vm238 = vweird.f32 %v170
    %vm239 = vweird.f32 %v232
    %vm240 = vmor %vm238, %vm239
    %v241 = vsel %vm240, %v232, %v237
    %v242 = vmul.f32 %v117, %v181
    %v243 = vmul.f32 %v118, %v191
    %v244 = vmul.f32 %v119, %v201
    %v245 = vmul.f32 %v120, %v211
    %v246 = vmul.f32 %v121, %v221
    %v247 = vmul.f32 %v122, %v231
    %v248 = vmul.f32 %v123, %v241
    %v249 = vld [vmem:[%s2] sm:$0xff]
    %v250 = vld [vmem:[%s2 + $0x8] sm:$0xff]
    %v251 = vld [vmem:[%s2 + $0x10] sm:$0xff]
    %v252 = vld [vmem:[%s2 + $0x18] sm:$0xff]
    %v253 = vld [vmem:[%s2 + $0x20] sm:$0xff]
    %v254 = vld [vmem:[%s2 + $0x28] sm:$0xff]
    %v255 = vld [vmem:[%s2 + $0x30] sm:$0x3]
    %257 = vset.pattern.permute.xlu0 0
    %258 = vperm.xlu0 %257, %v249
    %v259 = vpop.permute.xlu0 %258
    %262 = vset.pattern.permute.xlu0 0
    %263 = vperm.xlu0 %262, %v250
    %v264 = vpop.permute.xlu0 %263
    %267 = vset.pattern.permute.xlu0 0
    %268 = vperm.xlu0 %267, %v251
    %v269 = vpop.permute.xlu0 %268
    %272 = vset.pattern.permute.xlu0 0
    %273 = vperm.xlu0 %272, %v252
    %v274 = vpop.permute.xlu0 %273
    %277 = vset.pattern.permute.xlu0 0
    %278 = vperm.xlu0 %277, %v253
    %v279 = vpop.permute.xlu0 %278
    %282 = vset.pattern.permute.xlu0 0
    %283 = vperm.xlu0 %282, %v254
    %v284 = vpop.permute.xlu0 %283
    %287 = vset.pattern.permute.xlu0 0
    %288 = vperm.xlu0 %287, %v255
    %v289 = vpop.permute.xlu0 %288
    %v291 = vmul.f32 %v242, %v259
    %v292 = vmul.f32 %v243, %v264
    %v293 = vmul.f32 %v244, %v269
    %v294 = vmul.f32 %v245, %v274
    %v295 = vmul.f32 %v246, %v279
    %v296 = vmul.f32 %v247, %v284
    %v297 = vmul.f32 %v248, %v289
    %v298 = vld [vmem:[%s3] sm:$0x7f]
    %v299 = vld [vmem:[%s4] sm:$0x7f]
    %301 = vset.pattern.permute.xlu0 0
    %302 = vperm.xlu0 %301, %v299
    %v303 = vpop.permute.xlu0 %302
    %v306 = vsel %vm53, %v298, 0
    %v309 = vsel %vm75, %v297, 0
    %311 = vmatpush.msra.mxu0 0.0
    %312 = vmatpush.msra.mxu0 0.0
    %313 = vmatpush.msra.mxu0 0.0
    %314 = vmatpush.msra.mxu0 0.0
    %315 = vmatpush.msra.mxu0 0.0
    %316 = vmatpush.msra.mxu0 0.0
    %317 = vmatpush.msra.mxu0 0.0
    %318 = vmatpush.msra.mxu0 0.0
    %319 = vmatpush.msra.mxu0 0.0
    %320 = vmatpush.msra.mxu0 %v309
    %321 = vmatpush.msra.mxu0 %v296
    %322 = vmatpush.msra.mxu0 %v295
    %323 = vmatpush.msra.mxu0 %v294
    %324 = vmatpush.msra.mxu0 %v293
    %325 = vmatpush.msra.mxu0 %v292
    %326 = vmatpush.msra.mxu0 %v291
    %327 = vmatmul.f32.gmra.mxu0 %v306
    %v328 = vpop.f32.mrf.mxu0
    %v329 = vadd.f32 %v303, %v328
    %330 = vdwg.mxu0
    %v331 = vxor.u32 %v329, 2147483648
    %v332 = vmul.f32 %v331, 1.442695
    %v333 = vpow.pop %v332
    %v334 = vadd.f32 %v333, 1.0
    %v335 = vrcp.pop %v334
    %v336 = vmul.f32 %v334, %v335
    %v337 = vsub.f32 1.0, %v336
    %v338 = vmul.f32 %v335, %v337
    %v339 = vadd.f32 %v335, %v338
    %vm340 = vweird.f32 %v334
    %vm341 = vweird.f32 %v335
    %vm342 = vmor %vm340, %vm341
    %v343 = vsel %vm342, %v335, %v339
    %v344 = vand.u32 2147483647, %v334
    %vm345 = vcmp.eq.f32.partialorder %v344, 8.507059e+37
    %v346 = vand.u32 %v334, 2147483648
    %v347 = vor.u32 1.1754944e-38, %v346
    %v348 = vsel %vm345, %v347, %v343
    %v349 = vmul.f32 1.0, %v348
    %v350 = vld [vmem:[%s5] sm:$0xff]
    %v351 = vld [vmem:[%s5 + $0x8] sm:$0x3]
    %v352 = vld [vmem:[%s6] sm:$0xff]
    %v353 = vld [vmem:[%s6 + $0x8] sm:$0x3]
    %355 = vset.pattern.permute.xlu0 0
    %356 = vperm.xlu0 %355, %v352
    %v357 = vpop.permute.xlu0 %356
    %360 = vset.pattern.permute.xlu0 0
    %361 = vperm.xlu0 %360, %v353
    %v362 = vpop.permute.xlu0 %361
    %vm364 = vcmask 56320
    %v366 = vsel %vm364, %v350, 0
    %v369 = vsel %vm364, %v351, 0
    %vm371 = vcmask 1046528
    %v373 = vsel %vm371, %v349, 0
    %375 = vmatpush.msra.mxu0 0.0
    %376 = vmatpush.msra.mxu0 0.0
    %377 = vmatpush.msra.mxu0 0.0
    %378 = vmatpush.msra.mxu0 0.0
    %379 = vmatpush.msra.mxu0 0.0
    %380 = vmatpush.msra.mxu0 0.0
    %381 = vmatpush.msra.mxu0 0.0
    %382 = vmatpush.msra.mxu0 0.0
    %383 = vmatpush.msra.mxu0 0.0
    %384 = vmatpush.msra.mxu0 0.0
    %385 = vmatpush.msra.mxu0 0.0
    %386 = vmatpush.msra.mxu0 0.0
    %387 = vmatpush.msra.mxu0 0.0
    %388 = vmatpush.msra.mxu0 0.0
    %389 = vmatpush.msra.mxu0 0.0
    %390 = vmatpush.msra.mxu0 %v373
    %391 = vmatmul.f32.gmra.mxu0 %v366
    %v392 = vpop.f32.mrf.mxu0
    %v393 = vadd.f32 %v357, %v392
    %394 = vmatmul.f32.gmra.mxu0 %v369
    %v395 = vpop.f32.mrf.mxu0
    %v396 = vadd.f32 %v362, %v395
    %397 = vdwg.mxu0
    %v398 = vxor.u32 %v393, 2147483648
    %v399 = vxor.u32 %v396, 2147483648
    %v400 = vmul.f32 %v398, 1.442695
    %v401 = vpow.pop %v400
    %v402 = vmul.f32 %v399, 1.442695
    %v403 = vpow.pop %v402
    %v404 = vadd.f32 %v401, 1.0
    %v405 = vadd.f32 %v403, 1.0
    %v406 = vrcp.pop %v404
    %v407 = vmul.f32 %v404, %v406
    %v408 = vsub.f32 1.0, %v407
    %v409 = vmul.f32 %v406, %v408
    %v410 = vadd.f32 %v406, %v409
    %vm411 = vweird.f32 %v404
    %vm412 = vweird.f32 %v406
    %vm413 = vmor %vm411, %vm412
    %v414 = vsel %vm413, %v406, %v410
    %v415 = vand.u32 2147483647, %v404
    %vm416 = vcmp.eq.f32.partialorder %v415, 8.507059e+37
    %v417 = vand.u32 %v404, 2147483648
    %v418 = vor.u32 1.1754944e-38, %v417
    %v419 = vsel %vm416, %v418, %v414
    %v420 = vmul.f32 1.0, %v419
    %v421 = vrcp.pop %v405
    %v422 = vmul.f32 %v405, %v421
    %v423 = vsub.f32 1.0, %v422
    %v424 = vmul.f32 %v421, %v423
    %v425 = vadd.f32 %v421, %v424
    %vm426 = vweird.f32 %v405
    %vm427 = vweird.f32 %v421
    %vm428 = vmor %vm426, %vm427
    %v429 = vsel %vm428, %v421, %v425
    %v430 = vand.u32 2147483647, %v405
    %vm431 = vcmp.eq.f32.partialorder %v430, 8.507059e+37
    %v432 = vand.u32 %v405, 2147483648
    %v433 = vor.u32 1.1754944e-38, %v432
    %v434 = vsel %vm431, %v433, %v429
    %v435 = vmul.f32 1.0, %v434
    %v436 = vld [vmem:[%s7] sm:$0x7f]
    %v437 = vld [vmem:[%s8] sm:$0x7f]
    %439 = vset.pattern.permute.xlu0 0
    %440 = vperm.xlu0 %439, %v437
    %v441 = vpop.permute.xlu0 %440
    %vm443 = vcmask 80896
    %v445 = vsel %vm443, %v436, 0
    %v448 = vsel %vm75, %v435, 0
    %450 = vmatpush.msra.mxu0 0.0
    %451 = vmatpush.msra.mxu0 0.0
    %452 = vmatpush.msra.mxu0 0.0
    %453 = vmatpush.msra.mxu0 0.0
    %454 = vmatpush.msra.mxu0 0.0
    %455 = vmatpush.msra.mxu0 0.0
    %456 = vmatpush.msra.mxu0 0.0
    %457 = vmatpush.msra.mxu0 0.0
    %458 = vmatpush.msra.mxu0 0.0
    %459 = vmatpush.msra.mxu0 0.0
    %460 = vmatpush.msra.mxu0 0.0
    %461 = vmatpush.msra.mxu0 0.0
    %462 = vmatpush.msra.mxu0 0.0
    %463 = vmatpush.msra.mxu0 0.0
    %464 = vmatpush.msra.mxu0 %v448
    %465 = vmatpush.msra.mxu0 %v420
    %466 = vmatmul.f32.gmra.mxu0 %v445
    %v467 = vpop.f32.mrf.mxu0
    %v468 = vadd.f32 %v441, %v467
    %469 = vdwg.mxu0
    %v470 = vxor.u32 %v468, 2147483648
    %v471 = vmul.f32 %v470, 1.442695
    %v472 = vpow.pop %v471
    %v473 = vadd.f32 %v472, 1.0
    %v474 = vrcp.pop %v473
    %v475 = vmul.f32 %v473, %v474
    %v476 = vsub.f32 1.0, %v475
    %v477 = vmul.f32 %v474, %v476
    %v478 = vadd.f32 %v474, %v477
    %vm479 = vweird.f32 %v473
    %vm480 = vweird.f32 %v474
    %vm481 = vmor %vm479, %vm480
    %v482 = vsel %vm481, %v474, %v478
    %v483 = vand.u32 2147483647, %v473
    %vm484 = vcmp.eq.f32.partialorder %v483, 8.507059e+37
    %v485 = vand.u32 %v473, 2147483648
    %v486 = vor.u32 1.1754944e-38, %v485
    %v487 = vsel %vm484, %v486, %v482
    %v488 = vmul.f32 1.0, %v487
    %v489 = vld [vmem:[%s9] sm:$0xff]
    %v490 = vld [vmem:[%s9 + $0x8] sm:$0xff]
    %v491 = vld [vmem:[%s9 + $0x10] sm:$0xf]
    %v492 = vld [vmem:[%s10] sm:$0xff]
    %v493 = vld [vmem:[%s10 + $0x8] sm:$0xff]
    %v494 = vld [vmem:[%s10 + $0x10] sm:$0xf]
    %496 = vset.pattern.permute.xlu0 0
    %497 = vperm.xlu0 %496, %v492
    %v498 = vpop.permute.xlu0 %497
    %501 = vset.pattern.permute.xlu0 0
    %502 = vperm.xlu0 %501, %v493
    %v503 = vpop.permute.xlu0 %502
    %506 = vset.pattern.permute.xlu0 0
    %507 = vperm.xlu0 %506, %v494
    %v508 = vpop.permute.xlu0 %507
    %v511 = vsel %vm364, %v489, 0
    %v514 = vsel %vm364, %v490, 0
    %v517 = vsel %vm364, %v491, 0
    %v520 = vsel %vm371, %v488, 0
    %522 = vmatpush.msra.mxu0 0.0
    %523 = vmatpush.msra.mxu0 0.0
    %524 = vmatpush.msra.mxu0 0.0
    %525 = vmatpush.msra.mxu0 0.0
    %526 = vmatpush.msra.mxu0 0.0
    %527 = vmatpush.msra.mxu0 0.0
    %528 = vmatpush.msra.mxu0 0.0
    %529 = vmatpush.msra.mxu0 0.0
    %530 = vmatpush.msra.mxu0 0.0
    %531 = vmatpush.msra.mxu0 0.0
    %532 = vmatpush.msra.mxu0 0.0
    %533 = vmatpush.msra.mxu0 0.0
    %534 = vmatpush.msra.mxu0 0.0
    %535 = vmatpush.msra.mxu0 0.0
    %536 = vmatpush.msra.mxu0 0.0
    %537 = vmatpush.msra.mxu0 %v520
    %538 = vmatmul.f32.gmra.mxu0 %v511
    %v539 = vpop.f32.mrf.mxu0
    %v540 = vadd.f32 %v498, %v539
    %541 = vmatmul.f32.gmra.mxu0 %v514
    %v542 = vpop.f32.mrf.mxu0
    %v543 = vadd.f32 %v503, %v542
    %544 = vmatmul.f32.gmra.mxu0 %v517
    %v545 = vpop.f32.mrf.mxu0
    %v546 = vadd.f32 %v508, %v545
    %547 = vdwg.mxu0
    %v548 = vxor.u32 %v540, 2147483648
    %v549 = vxor.u32 %v543, 2147483648
    %v550 = vxor.u32 %v546, 2147483648
    %v551 = vmul.f32 %v548, 1.442695
    %v552 = vpow.pop %v551
    %v553 = vmul.f32 %v549, 1.442695
    %v554 = vpow.pop %v553
    %v555 = vmul.f32 %v550, 1.442695
    %v556 = vpow.pop %v555
    %v557 = vadd.f32 %v552, 1.0
    %v558 = vadd.f32 %v554, 1.0
    %v559 = vadd.f32 %v556, 1.0
    %v560 = vrcp.pop %v557
    %v561 = vmul.f32 %v557, %v560
    %v562 = vsub.f32 1.0, %v561
    %v563 = vmul.f32 %v560, %v562
    %v564 = vadd.f32 %v560, %v563
    %vm565 = vweird.f32 %v557
    %vm566 = vweird.f32 %v560
    %vm567 = vmor %vm565, %vm566
    %v568 = vsel %vm567, %v560, %v564
    %v569 = vand.u32 2147483647, %v557
    %vm570 = vcmp.eq.f32.partialorder %v569, 8.507059e+37
    %v571 = vand.u32 %v557, 2147483648
    %v572 = vor.u32 1.1754944e-38, %v571
    %v573 = vsel %vm570, %v572, %v568
    %v574 = vmul.f32 1.0, %v573
    %v575 = vrcp.pop %v558
    %v576 = vmul.f32 %v558, %v575
    %v577 = vsub.f32 1.0, %v576
    %v578 = vmul.f32 %v575, %v577
    %v579 = vadd.f32 %v575, %v578
    %vm580 = vweird.f32 %v558
    %vm581 = vweird.f32 %v575
    %vm582 = vmor %vm580, %vm581
    %v583 = vsel %vm582, %v575, %v579
    %v584 = vand.u32 2147483647, %v558
    %vm585 = vcmp.eq.f32.partialorder %v584, 8.507059e+37
    %v586 = vand.u32 %v558, 2147483648
    %v587 = vor.u32 1.1754944e-38, %v586
    %v588 = vsel %vm585, %v587, %v583
    %v589 = vmul.f32 1.0, %v588
    %v590 = vrcp.pop %v559
    %v591 = vmul.f32 %v559, %v590
    %v592 = vsub.f32 1.0, %v591
    %v593 = vmul.f32 %v590, %v592
    %v594 = vadd.f32 %v590, %v593
    %vm595 = vweird.f32 %v559
    %vm596 = vweird.f32 %v590
    %vm597 = vmor %vm595, %vm596
    %v598 = vsel %vm597, %v590, %v594
    %v599 = vand.u32 2147483647, %v559
    %vm600 = vcmp.eq.f32.partialorder %v599, 8.507059e+37
    %v601 = vand.u32 %v559, 2147483648
    %v602 = vor.u32 1.1754944e-38, %v601
    %v603 = vsel %vm600, %v602, %v598
    %v604 = vmul.f32 1.0, %v603
    %605 = vst [vmem:[#allocation2] sm:$0xff] %v574
    %606 = vst [vmem:[#allocation2 + $0x8] sm:$0xff] %v589
    %607 = vst [vmem:[#allocation2 + $0x10] sm:$0xf] %v604
    // Predicated region
    $region46: #{tpu_custom_call.1} parent=1 // pred_check
      _
    $region47: #{tpu_custom_call.1} parent=1 // pred_check_branch
      %609 = sbr.rel (0) target = $region49
    $region48: #{tpu_custom_call.1} parent=1 // pred_region
      %611 = vsyncadd [#allocation3], 0
      %s612 = sshll.u32 [#allocation2], 4
      %s613 = int_to_ptr.vmem [resolvable:$true] %s612
      %s614 = sshll.u32 %s11, 4
      %s615 = int_to_ptr.hbm [resolvable:$true] %s614
      %620 = dma.vmem_to_hbm [thread:$0]  %s613, 384, %s615, [#allocation3], 128, 128, 8
    $region49: #{tpu_custom_call.1} parent=1 // pred_fallthru
      _
    // Predicated region
    $region50: #{tpu_custom_call.1} parent=1 // pred_check
      _
    $region51: #{tpu_custom_call.1} parent=1 // pred_check_branch
      %622 = sbr.rel (0) target = $region53
    $region52: #{tpu_custom_call.1} parent=1 // pred_region
      %624 = dma.done [#allocation3], 384
    $region53: #{tpu_custom_call.1} parent=1 // pred_fallthru
      _
    %625 = vsyncpa [#allocation3], 1

</llo_original>
